<compile_context>
chip_gen: v6e
topology: v6e:2x2x1
jax: 0.10.0
libtpu: 0.0.40
codegen_flags: <defaults>
</compile_context>

<pallas_src>
import jax
import jax.numpy as jnp
from jax.experimental import pallas as pl
from jax.experimental.pallas import tpu as pltpu

LANE = 128  # vreg lane width: keep feature dims multiples of this


def _round_up(n, m):
    return ((n + m - 1) // m) * m


def _choose_block_m(batch):
    """Adaptive batch tile: one tile for small batches, >=2 large tiles for
    big batches (so v7x can shard the parallel axis over its 2 TensorCores).
    Always a multiple of 8 (f32 sublane granule)."""
    b8 = _round_up(max(int(batch), 1), 8)
    if b8 <= 256:
        return b8                                  # whole batch, single tile
    half = _round_up(-(-b8 // 2), 8)               # ceil(b8/2) rounded to 8
    return int(min(1024, half))


def _actor_kernel(x_ref, w1_ref, b1_ref, w2_ref, b2_ref, w3_ref, b3_ref, o_ref):
    x = x_ref[...]                       # (block_m, state_dim), state_dim tiny
    w1 = w1_ref[...]                     # (state_dim, H1) f32

    # Layer 1: Linear(state_dim -> H1) + ReLU.
    # K = state_dim (=3) is tiny -> fused VPU multiply-add chain (no MXU, no
    # broadcast accumulator seed); bias added once at the end.
    h1 = x[:, 0:1] * w1[0:1, :]
    for k in range(1, x_ref.shape[1]):   # static, tiny trip count
        h1 = h1 + x[:, k:k + 1] * w1[k:k + 1, :]
    h1 = jnp.maximum(h1 + b1_ref[...], 0.0)

    # Layer 2: Linear(H1 -> H2) + ReLU.  bf16 operands, f32 MXU accumulate.
    h2 = jnp.dot(h1.astype(jnp.bfloat16), w2_ref[...],
                 preferred_element_type=jnp.float32)
    h2 = jnp.maximum(h2 + b2_ref[...], 0.0)

    # Layer 3: Linear(H2 -> ACT_PAD) + Tanh; lane-dense 128-wide output store.
    h3 = jnp.dot(h2.astype(jnp.bfloat16), w3_ref[...],
                 preferred_element_type=jnp.float32)
    o_ref[...] = jnp.tanh(h3 + b3_ref[...]).astype(o_ref.dtype)


def actor_net_forward(x, padded_params, action_dim=1, block_m=None):
    """x: [B, state_dim] f32, padded_params from pad_actor_params.
    Returns [B, action_dim] f32."""
    w1, b1, w2, b2, w3, b3 = padded_params
    B, state_dim = x.shape
    act_pad = w3.shape[1]

    if block_m is None:
        block_m = _choose_block_m(B)

    # Pad batch up to a multiple of block_m so every tile is full.
    b_pad = _round_up(max(B, 1), block_m)
    if b_pad != B:
        x = jnp.pad(x, ((0, b_pad - B), (0, 0)))
    n_tiles = b_pad // block_m

    def const_spec(shape):
        # Weights/biases: same block every grid step -> VMEM-resident, and a
        # single buffer (double-buffering a constant block is pure VMEM waste).
        return pl.BlockSpec(shape, lambda i: tuple(0 for _ in shape),
                            pipeline_mode=pl.Buffered(1))

    out = pl.pallas_call(
        _actor_kernel,
        out_shape=jax.ShapeDtypeStruct((b_pad, act_pad), jnp.float32),
        grid=(n_tiles,),
        in_specs=[
            pl.BlockSpec((block_m, state_dim), lambda i: (i, 0)),
            const_spec(w1.shape), const_spec(b1.shape),
            const_spec(w2.shape), const_spec(b2.shape),
            const_spec(w3.shape), const_spec(b3.shape),
        ],
        out_specs=pl.BlockSpec((block_m, act_pad), lambda i: (i, 0)),
        compiler_params=pltpu.CompilerParams(
            dimension_semantics=("parallel",)),  # v7x: shard batch tiles over 2 TCs
    )(x, w1, b1, w2, b2, w3, b3)

    # Slice off the padded batch rows and padded action lanes.
    return out[:B, :action_dim]


def init_actor_params(key, state_dim=3, action_dim=1, hidden_dim=(400, 300)):
    """PyTorch-style Linear init (uniform +/- 1/sqrt(fan_in)); weights stored
    as [in, out] (transposed vs torch), biases as [1, out]. Unpadded f32."""
    h1, h2 = hidden_dim
    dims = [(state_dim, h1), (h1, h2), (h2, action_dim)]
    params = []
    for fan_in, fan_out in dims:
        key, kw, kb = jax.random.split(key, 3)
        bound = 1.0 / jnp.sqrt(float(fan_in))
        w = jax.random.uniform(kw, (fan_in, fan_out), jnp.float32, -bound, bound)
        b = jax.random.uniform(kb, (1, fan_out), jnp.float32, -bound, bound)
        params += [w, b]
    return tuple(params)


def pad_actor_params(params):
    """Zero-pad hidden/action feature dims up to multiples of 128 lanes and
    store the MXU weights (w2, w3) in bf16.  Padded bias entries and weight
    rows/cols are exactly 0.0, so the extra ReLU units output 0 and contribute
    nothing downstream; padded tanh output columns are sliced off in the
    wrapper.  state_dim (K of layer 1) is left unpadded and handled on the VPU
    in f32."""
    w1, b1, w2, b2, w3, b3 = params

    def pad_w(w, pad_in, pad_out, dtype):
        w = jnp.pad(w, ((0, pad_in - w.shape[0]), (0, pad_out - w.shape[1])))
        return w.astype(dtype)

    def pad_b(b, pad_out):
        return jnp.pad(b, ((0, 0), (0, pad_out - b.shape[1])))

    state_dim = w1.shape[0]
    h1p = _round_up(w1.shape[1], LANE)   # 400 -> 512
    h2p = _round_up(w2.shape[1], LANE)   # 300 -> 384
    ap = _round_up(w3.shape[1], LANE)    # 1   -> 128
    return (pad_w(w1, state_dim, h1p, jnp.float32), pad_b(b1, h1p),
            pad_w(w2, h1p, h2p, jnp.bfloat16), pad_b(b2, h2p),
            pad_w(w3, h2p, ap, jnp.bfloat16), pad_b(b3, ap))


def actor_net_reference(x, params):
    """Pure-JAX f32 reference (unpadded) for correctness checking."""
    w1, b1, w2, b2, w3, b3 = params
    h1 = jnp.maximum(x @ w1 + b1, 0.0)
    h2 = jnp.maximum(h1 @ w2 + b2, 0.0)
    return jnp.tanh(h2 @ w3 + b3)


if __name__ == "__main__":
    key = jax.random.PRNGKey(0)
    key, kx = jax.random.split(key)

    batch, state_dim, action_dim = 8, 3, 1
    x = jax.random.normal(kx, (batch, state_dim), jnp.float32)
    params = init_actor_params(key, state_dim=state_dim, action_dim=action_dim)
    padded_params = pad_actor_params(params)   # done once, reused every call

    out = actor_net_forward(x, padded_params, action_dim=action_dim)
    out = jax.block_until_ready(out)

    ref = actor_net_reference(x, params)
    assert out.shape == (batch, action_dim), out.shape
    # bf16 MXU operands (f32 accumulate) -> ~1e-2-level tolerance vs f32 ref.
    assert jnp.allclose(out, ref, atol=1e-2, rtol=1e-2), (
        f"max abs err = {jnp.max(jnp.abs(out - ref))}")

    print("KERNEL_OK")
</pallas_src>

<mosaic_0001>
module attributes {stable_mosaic.version = 11 : i64} {
  func.func @_actor_kernel(%arg0: i32, %arg1: memref<8x3xf32, #tpu.memory_space<vmem>>, %arg2: memref<3x512xf32, #tpu.memory_space<vmem>>, %arg3: memref<1x512xf32, #tpu.memory_space<vmem>>, %arg4: memref<512x384xbf16, #tpu.memory_space<vmem>>, %arg5: memref<1x384xf32, #tpu.memory_space<vmem>>, %arg6: memref<384x128xbf16, #tpu.memory_space<vmem>>, %arg7: memref<1x128xf32, #tpu.memory_space<vmem>>, %arg8: memref<8x128xf32, #tpu.memory_space<vmem>>) attributes {dimension_semantics = [#tpu.dimension_semantics<parallel>], iteration_bounds = array<i64: 1>, scalar_prefetch = 0 : i64, scratch_operands = 0 : i64, tpu.core_type = #tpu.core_type<tc>, window_params = [{transform_indices = @transform_0, window_bounds = array<i64: 8, 3>}, {pipeline_mode = #tpu.pipeline_mode<synchronous>, transform_indices = @transform_1, window_bounds = array<i64: 3, 512>}, {pipeline_mode = #tpu.pipeline_mode<synchronous>, transform_indices = @transform_2, window_bounds = array<i64: 1, 512>}, {pipeline_mode = #tpu.pipeline_mode<synchronous>, transform_indices = @transform_3, window_bounds = array<i64: 512, 384>}, {pipeline_mode = #tpu.pipeline_mode<synchronous>, transform_indices = @transform_4, window_bounds = array<i64: 1, 384>}, {pipeline_mode = #tpu.pipeline_mode<synchronous>, transform_indices = @transform_5, window_bounds = array<i64: 384, 128>}, {pipeline_mode = #tpu.pipeline_mode<synchronous>, transform_indices = @transform_6, window_bounds = array<i64: 1, 128>}, {transform_indices = @transform_7, window_bounds = array<i64: 8, 128>}]} {
    %c0 = arith.constant 0 : index
    %c0_0 = arith.constant 0 : index
    %0 = vector.load %arg1[%c0, %c0_0] : memref<8x3xf32, #tpu.memory_space<vmem>>, vector<8x3xf32>
    %c0_1 = arith.constant 0 : index
    %c0_2 = arith.constant 0 : index
    %1 = vector.load %arg2[%c0_1, %c0_2] : memref<3x512xf32, #tpu.memory_space<vmem>>, vector<3x512xf32>
    %2 = vector.extract_strided_slice %0 {offsets = [0, 0], sizes = [8, 1], strides = [1, 1]} : vector<8x3xf32> to vector<8x1xf32>
    %3 = vector.extract_strided_slice %1 {offsets = [0, 0], sizes = [1, 512], strides = [1, 1]} : vector<3x512xf32> to vector<1x512xf32>
    %4 = vector.broadcast %2 : vector<8x1xf32> to vector<8x512xf32>
    %5 = vector.broadcast %3 : vector<1x512xf32> to vector<8x512xf32>
    %6 = arith.mulf %4, %5 : vector<8x512xf32>
    %7 = vector.extract_strided_slice %0 {offsets = [0, 1], sizes = [8, 1], strides = [1, 1]} : vector<8x3xf32> to vector<8x1xf32>
    %8 = vector.extract_strided_slice %1 {offsets = [1, 0], sizes = [1, 512], strides = [1, 1]} : vector<3x512xf32> to vector<1x512xf32>
    %9 = vector.broadcast %7 : vector<8x1xf32> to vector<8x512xf32>
    %10 = vector.broadcast %8 : vector<1x512xf32> to vector<8x512xf32>
    %11 = arith.mulf %9, %10 : vector<8x512xf32>
    %12 = arith.addf %6, %11 : vector<8x512xf32>
    %13 = vector.extract_strided_slice %0 {offsets = [0, 2], sizes = [8, 1], strides = [1, 1]} : vector<8x3xf32> to vector<8x1xf32>
    %14 = vector.extract_strided_slice %1 {offsets = [2, 0], sizes = [1, 512], strides = [1, 1]} : vector<3x512xf32> to vector<1x512xf32>
    %15 = vector.broadcast %13 : vector<8x1xf32> to vector<8x512xf32>
    %16 = vector.broadcast %14 : vector<1x512xf32> to vector<8x512xf32>
    %17 = arith.mulf %15, %16 : vector<8x512xf32>
    %18 = arith.addf %12, %17 : vector<8x512xf32>
    %c0_3 = arith.constant 0 : index
    %c0_4 = arith.constant 0 : index
    %19 = vector.load %arg3[%c0_3, %c0_4] : memref<1x512xf32, #tpu.memory_space<vmem>>, vector<1x512xf32>
    %20 = vector.broadcast %19 : vector<1x512xf32> to vector<8x512xf32>
    %21 = arith.addf %18, %20 : vector<8x512xf32>
    %cst = arith.constant 0.000000e+00 : f32
    %22 = vector.broadcast %cst : f32 to vector<8x512xf32>
    %23 = arith.maximumf %21, %22 : vector<8x512xf32>
    %24 = arith.truncf %23 : vector<8x512xf32> to vector<8x512xbf16>
    %c0_5 = arith.constant 0 : index
    %c0_6 = arith.constant 0 : index
    %25 = vector.load %arg4[%c0_5, %c0_6] : memref<512x384xbf16, #tpu.memory_space<vmem>>, vector<512x384xbf16>
    %cst_7 = arith.constant dense<0.000000e+00> : vector<8x384xf32>
    %26 = tpu.matmul %24, %25, %cst_7 {dimension_numbers = #tpu.dot_dimension_numbers<[1], [0], [0], [1], [0, 0, 1, 1], [], []>} : vector<8x512xbf16>, vector<512x384xbf16>, vector<8x384xf32> -> vector<8x384xf32>
    %c0_8 = arith.constant 0 : index
    %c0_9 = arith.constant 0 : index
    %27 = vector.load %arg5[%c0_8, %c0_9] : memref<1x384xf32, #tpu.memory_space<vmem>>, vector<1x384xf32>
    %28 = vector.broadcast %27 : vector<1x384xf32> to vector<8x384xf32>
    %29 = arith.addf %26, %28 : vector<8x384xf32>
    %cst_10 = arith.constant 0.000000e+00 : f32
    %30 = vector.broadcast %cst_10 : f32 to vector<8x384xf32>
    %31 = arith.maximumf %29, %30 : vector<8x384xf32>
    %32 = arith.truncf %31 : vector<8x384xf32> to vector<8x384xbf16>
    %c0_11 = arith.constant 0 : index
    %c0_12 = arith.constant 0 : index
    %33 = vector.load %arg6[%c0_11, %c0_12] : memref<384x128xbf16, #tpu.memory_space<vmem>>, vector<384x128xbf16>
    %cst_13 = arith.constant dense<0.000000e+00> : vector<8x128xf32>
    %34 = tpu.matmul %32, %33, %cst_13 {dimension_numbers = #tpu.dot_dimension_numbers<[1], [0], [0], [1], [0, 0, 1, 1], [], []>} : vector<8x384xbf16>, vector<384x128xbf16>, vector<8x128xf32> -> vector<8x128xf32>
    %c0_14 = arith.constant 0 : index
    %c0_15 = arith.constant 0 : index
    %35 = vector.load %arg7[%c0_14, %c0_15] : memref<1x128xf32, #tpu.memory_space<vmem>>, vector<1x128xf32>
    %36 = vector.broadcast %35 : vector<1x128xf32> to vector<8x128xf32>
    %37 = arith.addf %34, %36 : vector<8x128xf32>
    %38 = math.tanh %37 : vector<8x128xf32>
    %c0_16 = arith.constant 0 : index
    %c0_17 = arith.constant 0 : index
    %39 = vector.load %arg8[%c0_16, %c0_17] : memref<8x128xf32, #tpu.memory_space<vmem>>, vector<8x128xf32>
    tpu.vector_store %arg8[%c0_16, %c0_17], %38 {strides = array<i32>} : memref<8x128xf32, #tpu.memory_space<vmem>>, vector<8x128xf32>,
    return
  }
  func.func @transform_0(%arg0: i32) -> (i32, i32) {
    %c0_i32 = arith.constant 0 : i32
    %c0_i32_0 = arith.constant 0 : i32
    return %arg0, %c0_i32 : i32, i32
  }
  func.func @transform_1(%arg0: i32) -> (i32, i32) {
    %c0_i32 = arith.constant 0 : i32
    %c0_i32_0 = arith.constant 0 : i32
    %c0_i32_1 = arith.constant 0 : i32
    return %c0_i32, %c0_i32_0 : i32, i32
  }
  func.func @transform_2(%arg0: i32) -> (i32, i32) {
    %c0_i32 = arith.constant 0 : i32
    %c0_i32_0 = arith.constant 0 : i32
    %c0_i32_1 = arith.constant 0 : i32
    return %c0_i32, %c0_i32_0 : i32, i32
  }
  func.func @transform_3(%arg0: i32) -> (i32, i32) {
    %c0_i32 = arith.constant 0 : i32
    %c0_i32_0 = arith.constant 0 : i32
    %c0_i32_1 = arith.constant 0 : i32
    return %c0_i32, %c0_i32_0 : i32, i32
  }
  func.func @transform_4(%arg0: i32) -> (i32, i32) {
    %c0_i32 = arith.constant 0 : i32
    %c0_i32_0 = arith.constant 0 : i32
    %c0_i32_1 = arith.constant 0 : i32
    return %c0_i32, %c0_i32_0 : i32, i32
  }
  func.func @transform_5(%arg0: i32) -> (i32, i32) {
    %c0_i32 = arith.constant 0 : i32
    %c0_i32_0 = arith.constant 0 : i32
    %c0_i32_1 = arith.constant 0 : i32
    return %c0_i32, %c0_i32_0 : i32, i32
  }
  func.func @transform_6(%arg0: i32) -> (i32, i32) {
    %c0_i32 = arith.constant 0 : i32
    %c0_i32_0 = arith.constant 0 : i32
    %c0_i32_1 = arith.constant 0 : i32
    return %c0_i32, %c0_i32_0 : i32, i32
  }
  func.func @transform_7(%arg0: i32) -> (i32, i32) {
    %c0_i32 = arith.constant 0 : i32
    %c0_i32_0 = arith.constant 0 : i32
    return %arg0, %c0_i32 : i32, i32
  }
}

</mosaic_0001>

<llo_original>
// kernel: tpu_custom_call.1
$region0: #{tpu_custom_call.1}
  #allocation0 [shape = 'u32[]', space=smem, size = 0x4, offset = 0x4, fixed_abs, tag = 'smem constant byte address 0x4 - core index']
  #allocation1 [shape = 'u32[144,128]{1,0:T(1,128)}', space=vmem, size = 0x12000, scoped, tag = 'internal scratch']
  %s0 = inlined_call_operand.vmem [shape: f32[8,3], index: 0, kind: input, shape index: {}]
  %s1 = inlined_call_operand.hbm [shape: f32[3,512], index: 1, kind: input, shape index: {}]
  %s2 = inlined_call_operand.vmem [shape: f32[1,512], index: 2, kind: input, shape index: {}]
  %s3 = inlined_call_operand.hbm [shape: bf16[512,384], index: 3, kind: input, shape index: {}]
  %s4 = inlined_call_operand.vmem [shape: f32[1,384], index: 4, kind: input, shape index: {}]
  %s5 = inlined_call_operand.hbm [shape: bf16[384,128], index: 5, kind: input, shape index: {}]
  %s6 = inlined_call_operand.vmem [shape: f32[1,128], index: 6, kind: input, shape index: {}]
  %s7 = inlined_call_operand.hbm [shape: f32[8,128], index: 7, kind: output, shape index: {}]
  %s8 = sld [smem:[#allocation0]]
  $region50: #{tpu_custom_call.1} parent=0
    _
  %s10 = ssub.s32 1, %s8
  %s11 = scalar_select 0, %s10, %s8
  $region1: #{tpu_custom_call.1} parent=0
    #allocation2 [shape = 'u8[8192]{0}', space=vmem, size = 0x2000, scoped, tag = 'input window, operand 1, single buffered']
    #allocation3 [shape = 's32[1]{0}', space=sflag, size = 0x4, scoped, tag = 'scoped memory for tpu_custom_call.1']
    #allocation4 [shape = 's32[1]{0}', space=sflag, size = 0x4, scoped, tag = 'scoped memory for tpu_custom_call.1']
    #allocation5 [shape = 'u8[393216]{0}', space=vmem, size = 0x60000, scoped, tag = 'input window, operand 3, single buffered']
    #allocation6 [shape = 's32[1]{0}', space=sflag, size = 0x4, scoped, tag = 'scoped memory for tpu_custom_call.1']
    #allocation7 [shape = 'u8[98304]{0}', space=vmem, size = 0x18000, scoped, tag = 'input window, operand 5, single buffered']
    #allocation8 [shape = 'u8[4096]{0}', space=vmem, size = 0x1000, scoped, tag = 'output window, operand 0, single buffered']
    %12 = vsyncpa [#allocation3], 0
    %13 = vsyncpa [#allocation6], 0
    %14 = vsyncpa [#allocation4], 0
    // Predicated region
    $region2: #{tpu_custom_call.1} parent=1 // pred_check
      _
    $region3: #{tpu_custom_call.1} parent=1 // pred_check_branch
      %16 = sbr.rel (0) target = $region5
    $region4: #{tpu_custom_call.1} parent=1 // pred_region
      _
    $region5: #{tpu_custom_call.1} parent=1 // pred_fallthru
      _
    // Predicated region
    $region6: #{tpu_custom_call.1} parent=1 // pred_check
      _
    $region7: #{tpu_custom_call.1} parent=1 // pred_check_branch
      %18 = sbr.rel (0) target = $region9
    $region8: #{tpu_custom_call.1} parent=1 // pred_region
      %s20 = ssub.s32 256, 256
      %21 = vsyncadd [#allocation3], %s20
      %s23 = sshll.u32 [#allocation2], 4
      %s24 = int_to_ptr.vmem [resolvable:$true] %s23
      %26 = dma.hbm_to_vmem [thread:$0]  %s1, 256, %s24, [#allocation3]
    $region9: #{tpu_custom_call.1} parent=1 // pred_fallthru
      _
    // Predicated region
    $region10: #{tpu_custom_call.1} parent=1 // pred_check
      _
    $region11: #{tpu_custom_call.1} parent=1 // pred_check_branch
      %28 = sbr.rel (0) target = $region13
    $region12: #{tpu_custom_call.1} parent=1 // pred_region
      _
    $region13: #{tpu_custom_call.1} parent=1 // pred_fallthru
      _
    // Predicated region
    $region14: #{tpu_custom_call.1} parent=1 // pred_check
      _
    $region15: #{tpu_custom_call.1} parent=1 // pred_check_branch
      %30 = sbr.rel (0) target = $region17
    $region16: #{tpu_custom_call.1} parent=1 // pred_region
      %s32 = ssub.s32 12288, 12288
      %33 = vsyncadd [#allocation6], %s32
      %s34 = sshll.u32 [#allocation5], 4
      %s35 = int_to_ptr.vmem [resolvable:$true] %s34
      %40 = dma.hbm_to_vmem [thread:$0]  %s3, 12288, %s35, [#allocation6], 192, 192, 12
    $region17: #{tpu_custom_call.1} parent=1 // pred_fallthru
      _
    // Predicated region
    $region18: #{tpu_custom_call.1} parent=1 // pred_check
      _
    $region19: #{tpu_custom_call.1} parent=1 // pred_check_branch
      %42 = sbr.rel (0) target = $region21
    $region20: #{tpu_custom_call.1} parent=1 // pred_region
      _
    $region21: #{tpu_custom_call.1} parent=1 // pred_fallthru
      _
    // Predicated region
    $region22: #{tpu_custom_call.1} parent=1 // pred_check
      _
    $region23: #{tpu_custom_call.1} parent=1 // pred_check_branch
      %44 = sbr.rel (0) target = $region25
    $region24: #{tpu_custom_call.1} parent=1 // pred_region
      %s46 = ssub.s32 3072, 3072
      %47 = vsyncadd [#allocation6], %s46
      %s48 = sshll.u32 [#allocation7], 4
      %s49 = int_to_ptr.vmem [resolvable:$true] %s48
      %54 = dma.hbm_to_vmem [thread:$0]  %s5, 3072, %s49, [#allocation6], 64, 64, 4
    $region25: #{tpu_custom_call.1} parent=1 // pred_fallthru
      _
    // Predicated region
    $region26: #{tpu_custom_call.1} parent=1 // pred_check
      _
    $region27: #{tpu_custom_call.1} parent=1 // pred_check_branch
      %56 = sbr.rel (0) target = $region29
    $region28: #{tpu_custom_call.1} parent=1 // pred_region
      _
    $region29: #{tpu_custom_call.1} parent=1 // pred_fallthru
      _
    // Predicated region
    $region30: #{tpu_custom_call.1} parent=1 // pred_check
      _
    $region31: #{tpu_custom_call.1} parent=1 // pred_check_branch
      %58 = sbr.rel (0) target = $region33
    $region32: #{tpu_custom_call.1} parent=1 // pred_region
      %59 = dma.done [#allocation3], 256
    $region33: #{tpu_custom_call.1} parent=1 // pred_fallthru
      _
    // Predicated region
    $region34: #{tpu_custom_call.1} parent=1 // pred_check
      _
    $region35: #{tpu_custom_call.1} parent=1 // pred_check_branch
      %61 = sbr.rel (0) target = $region37
    $region36: #{tpu_custom_call.1} parent=1 // pred_region
      %62 = dma.done [#allocation6], 12288
    $region37: #{tpu_custom_call.1} parent=1 // pred_fallthru
      _
    // Predicated region
    $region38: #{tpu_custom_call.1} parent=1 // pred_check
      _
    $region39: #{tpu_custom_call.1} parent=1 // pred_check_branch
      %64 = sbr.rel (0) target = $region41
    $region40: #{tpu_custom_call.1} parent=1 // pred_region
      %65 = dma.done [#allocation6], 3072
    $region41: #{tpu_custom_call.1} parent=1 // pred_fallthru
      _
    %v67 = vld [vmem:[%s0] sm:$0xff]
    %v68 = vld [vmem:[#allocation2] sm:$0x77]
    %v69 = vld [vmem:[#allocation2 + $0x8] sm:$0x77]
    %71 = vset.pattern.permute.xlu0 0
    %72 = vperm.xlu0 %71, %v67
    %v73 = vpop.permute.xlu0 %72
    %v77 = vlaneseq
    %v78 = vshrl.u32 %v77, 7
    %v79 = vsub.s32 0, %v78
    %v80 = vrot.slane %v68, %v79
    %v81 = vlaneseq
    %v82 = vshrl.u32 %v81, 7
    %v83 = vsub.s32 4, %v82
    %v84 = vrot.slane %v68, %v83
    %v85 = vlaneseq
    %v86 = vshrl.u32 %v85, 7
    %v87 = vsub.s32 0, %v86
    %v88 = vrot.slane %v69, %v87
    %v89 = vlaneseq
    %v90 = vshrl.u32 %v89, 7
    %v91 = vsub.s32 4, %v90
    %v92 = vrot.slane %v69, %v91
    %v97 = vlaneseq
    %v98 = vshrl.u32 %v97, 7
    %v99 = vsub.s32 0, %v98
    %v100 = vrot.slane %v80, %v99
    %v101 = vlaneseq
    %v102 = vshrl.u32 %v101, 7
    %v103 = vsub.s32 0, %v102
    %v104 = vrot.slane %v84, %v103
    %v105 = vlaneseq
    %v106 = vshrl.u32 %v105, 7
    %v107 = vsub.s32 0, %v106
    %v108 = vrot.slane %v88, %v107
    %v109 = vlaneseq
    %v110 = vshrl.u32 %v109, 7
    %v111 = vsub.s32 0, %v110
    %v112 = vrot.slane %v92, %v111
    %v113 = vmul.f32 %v73, %v100
    %v114 = vmul.f32 %v73, %v104
    %v115 = vmul.f32 %v73, %v108
    %v116 = vmul.f32 %v73, %v112
    %117 = vset.pattern.permute.xlu0 1
    %118 = vperm.xlu0 %117, %v67
    %v119 = vpop.permute.xlu0 %118
    %v121 = vlaneseq
    %v122 = vshrl.u32 %v121, 7
    %v123 = vsub.s32 1, %v122
    %v124 = vrot.slane %v68, %v123
    %v125 = vlaneseq
    %v126 = vshrl.u32 %v125, 7
    %v127 = vsub.s32 5, %v126
    %v128 = vrot.slane %v68, %v127
    %v129 = vlaneseq
    %v130 = vshrl.u32 %v129, 7
    %v131 = vsub.s32 1, %v130
    %v132 = vrot.slane %v69, %v131
    %v133 = vlaneseq
    %v134 = vshrl.u32 %v133, 7
    %v135 = vsub.s32 5, %v134
    %v136 = vrot.slane %v69, %v135
    %v141 = vlaneseq
    %v142 = vshrl.u32 %v141, 7
    %v143 = vsub.s32 1, %v142
    %v144 = vrot.slane %v124, %v143
    %v145 = vlaneseq
    %v146 = vshrl.u32 %v145, 7
    %v147 = vsub.s32 1, %v146
    %v148 = vrot.slane %v128, %v147
    %v149 = vlaneseq
    %v150 = vshrl.u32 %v149, 7
    %v151 = vsub.s32 1, %v150
    %v152 = vrot.slane %v132, %v151
    %v153 = vlaneseq
    %v154 = vshrl.u32 %v153, 7
    %v155 = vsub.s32 1, %v154
    %v156 = vrot.slane %v136, %v155
    %v157 = vmul.f32 %v119, %v144
    %v158 = vmul.f32 %v119, %v148
    %v159 = vmul.f32 %v119, %v152
    %v160 = vmul.f32 %v119, %v156
    %v161 = vadd.f32 %v113, %v157
    %v162 = vadd.f32 %v114, %v158
    %v163 = vadd.f32 %v115, %v159
    %v164 = vadd.f32 %v116, %v160
    %165 = vset.pattern.permute.xlu0 2
    %166 = vperm.xlu0 %165, %v67
    %v167 = vpop.permute.xlu0 %166
    %v169 = vlaneseq
    %v170 = vshrl.u32 %v169, 7
    %v171 = vsub.s32 2, %v170
    %v172 = vrot.slane %v68, %v171
    %v173 = vlaneseq
    %v174 = vshrl.u32 %v173, 7
    %v175 = vsub.s32 6, %v174
    %v176 = vrot.slane %v68, %v175
    %v177 = vlaneseq
    %v178 = vshrl.u32 %v177, 7
    %v179 = vsub.s32 2, %v178
    %v180 = vrot.slane %v69, %v179
    %v181 = vlaneseq
    %v182 = vshrl.u32 %v181, 7
    %v183 = vsub.s32 6, %v182
    %v184 = vrot.slane %v69, %v183
    %v189 = vlaneseq
    %v190 = vshrl.u32 %v189, 7
    %v191 = vsub.s32 2, %v190
    %v192 = vrot.slane %v172, %v191
    %v193 = vlaneseq
    %v194 = vshrl.u32 %v193, 7
    %v195 = vsub.s32 2, %v194
    %v196 = vrot.slane %v176, %v195
    %v197 = vlaneseq
    %v198 = vshrl.u32 %v197, 7
    %v199 = vsub.s32 2, %v198
    %v200 = vrot.slane %v180, %v199
    %v201 = vlaneseq
    %v202 = vshrl.u32 %v201, 7
    %v203 = vsub.s32 2, %v202
    %v204 = vrot.slane %v184, %v203
    %v205 = vmul.f32 %v167, %v192
    %v206 = vmul.f32 %v167, %v196
    %v207 = vmul.f32 %v167, %v200
    %v208 = vmul.f32 %v167, %v204
    %v209 = vadd.f32 %v161, %v205
    %v210 = vadd.f32 %v162, %v206
    %v211 = vadd.f32 %v163, %v207
    %v212 = vadd.f32 %v164, %v208
    %v213 = vld [vmem:[%s2] sm:$0xf]
    %v215 = vlaneseq
    %v216 = vshrl.u32 %v215, 7
    %v217 = vsub.s32 0, %v216
    %v218 = vrot.slane %v213, %v217
    %v219 = vlaneseq
    %v220 = vshrl.u32 %v219, 7
    %v221 = vsub.s32 1, %v220
    %v222 = vrot.slane %v213, %v221
    %v223 = vlaneseq
    %v224 = vshrl.u32 %v223, 7
    %v225 = vsub.s32 2, %v224
    %v226 = vrot.slane %v213, %v225
    %v227 = vlaneseq
    %v228 = vshrl.u32 %v227, 7
    %v229 = vsub.s32 3, %v228
    %v230 = vrot.slane %v213, %v229
    %v235 = vadd.f32 %v209, %v218
    %v236 = vadd.f32 %v210, %v222
    %v237 = vadd.f32 %v211, %v226
    %v238 = vadd.f32 %v212, %v230
    %v239 = vmax.f32 %v235, 0.0
    %v240 = vmax.f32 %v236, 0.0
    %v241 = vmax.f32 %v237, 0.0
    %v242 = vmax.f32 %v238, 0.0
    %v243 = vpack.c.bf16 %v239, %v239
    %v244 = vpack.c.bf16 %v240, %v240
    %v245 = vpack.c.bf16 %v241, %v241
    %v246 = vpack.c.bf16 %v242, %v242
    %v247 = vld [vmem:[#allocation5] sm:$0xff]
    %v248 = vld [vmem:[#allocation5 + $0x8] sm:$0xf]
    %v249 = vld [vmem:[#allocation5 + $0xc] sm:$0xff]
    %v250 = vld [vmem:[#allocation5 + $0x14] sm:$0xf]
    %v251 = vld [vmem:[#allocation5 + $0x18] sm:$0xff]
    %v252 = vld [vmem:[#allocation5 + $0x20] sm:$0xf]
    %v253 = vld [vmem:[#allocation5 + $0x24] sm:$0xff]
    %v254 = vld [vmem:[#allocation5 + $0x2c] sm:$0xf]
    %v255 = vld [vmem:[#allocation5 + $0x30] sm:$0xff]
    %v256 = vld [vmem:[#allocation5 + $0x38] sm:$0xf]
    %v257 = vld [vmem:[#allocation5 + $0x3c] sm:$0xff]
    %v258 = vld [vmem:[#allocation5 + $0x44] sm:$0xf]
    %v259 = vld [vmem:[#allocation5 + $0x48] sm:$0xff]
    %v260 = vld [vmem:[#allocation5 + $0x50] sm:$0xf]
    %v261 = vld [vmem:[#allocation5 + $0x54] sm:$0xff]
    %v262 = vld [vmem:[#allocation5 + $0x5c] sm:$0xf]
    %v263 = vld [vmem:[#allocation5 + $0x60] sm:$0xff]
    %v264 = vld [vmem:[#allocation5 + $0x68] sm:$0xf]
    %v265 = vld [vmem:[#allocation5 + $0x6c] sm:$0xff]
    %v266 = vld [vmem:[#allocation5 + $0x74] sm:$0xf]
    %v267 = vld [vmem:[#allocation5 + $0x78] sm:$0xff]
    %v268 = vld [vmem:[#allocation5 + $0x80] sm:$0xf]
    %v269 = vld [vmem:[#allocation5 + $0x84] sm:$0xff]
    %v270 = vld [vmem:[#allocation5 + $0x8c] sm:$0xf]
    %v271 = vld [vmem:[#allocation5 + $0x90] sm:$0xff]
    %v272 = vld [vmem:[#allocation5 + $0x98] sm:$0xf]
    %v273 = vld [vmem:[#allocation5 + $0x9c] sm:$0xff]
    %v274 = vld [vmem:[#allocation5 + $0xa4] sm:$0xf]
    %v275 = vld [vmem:[#allocation5 + $0xa8] sm:$0xff]
    %v276 = vld [vmem:[#allocation5 + $0xb0] sm:$0xf]
    %v277 = vld [vmem:[#allocation5 + $0xb4] sm:$0xff]
    %v278 = vld [vmem:[#allocation5 + $0xbc] sm:$0xf]
    %v279 = vld [vmem:[#allocation5 + $0xc0] sm:$0xff]
    %v280 = vld [vmem:[#allocation5 + $0xc8] sm:$0xf]
    %v281 = vld [vmem:[#allocation5 + $0xcc] sm:$0xff]
    %v282 = vld [vmem:[#allocation5 + $0xd4] sm:$0xf]
    %v283 = vld [vmem:[#allocation5 + $0xd8] sm:$0xff]
    %v284 = vld [vmem:[#allocation5 + $0xe0] sm:$0xf]
    %v285 = vld [vmem:[#allocation5 + $0xe4] sm:$0xff]
    %v286 = vld [vmem:[#allocation5 + $0xec] sm:$0xf]
    %v287 = vld [vmem:[#allocation5 + $0xf0] sm:$0xff]
    %v288 = vld [vmem:[#allocation5 + $0xf8] sm:$0xf]
    %v289 = vld [vmem:[#allocation5 + $0xfc] sm:$0xff]
    %v290 = vld [vmem:[#allocation5 + $0x104] sm:$0xf]
    %v291 = vld [vmem:[#allocation5 + $0x108] sm:$0xff]
    %v292 = vld [vmem:[#allocation5 + $0x110] sm:$0xf]
    %v293 = vld [vmem:[#allocation5 + $0x114] sm:$0xff]
    %v294 = vld [vmem:[#allocation5 + $0x11c] sm:$0xf]
    %v295 = vld [vmem:[#allocation5 + $0x120] sm:$0xff]
    %v296 = vld [vmem:[#allocation5 + $0x128] sm:$0xf]
    %v297 = vld [vmem:[#allocation5 + $0x12c] sm:$0xff]
    %v298 = vld [vmem:[#allocation5 + $0x134] sm:$0xf]
    %v299 = vld [vmem:[#allocation5 + $0x138] sm:$0xff]
    %v300 = vld [vmem:[#allocation5 + $0x140] sm:$0xf]
    %v301 = vld [vmem:[#allocation5 + $0x144] sm:$0xff]
    %v302 = vld [vmem:[#allocation5 + $0x14c] sm:$0xf]
    %v303 = vld [vmem:[#allocation5 + $0x150] sm:$0xff]
    %v304 = vld [vmem:[#allocation5 + $0x158] sm:$0xf]
    %v305 = vld [vmem:[#allocation5 + $0x15c] sm:$0xff]
    %v306 = vld [vmem:[#allocation5 + $0x164] sm:$0xf]
    %v307 = vld [vmem:[#allocation5 + $0x168] sm:$0xff]
    %v308 = vld [vmem:[#allocation5 + $0x170] sm:$0xf]
    %v309 = vld [vmem:[#allocation5 + $0x174] sm:$0xff]
    %v310 = vld [vmem:[#allocation5 + $0x17c] sm:$0xf]
    %v311 = vld [vmem:[#allocation5 + $0x180] sm:$0xff]
    %v312 = vld [vmem:[#allocation5 + $0x188] sm:$0xf]
    %v313 = vld [vmem:[#allocation5 + $0x18c] sm:$0xff]
    %v314 = vld [vmem:[#allocation5 + $0x194] sm:$0xf]
    %v315 = vld [vmem:[#allocation5 + $0x198] sm:$0xff]
    %v316 = vld [vmem:[#allocation5 + $0x1a0] sm:$0xf]
    %v317 = vld [vmem:[#allocation5 + $0x1a4] sm:$0xff]
    %v318 = vld [vmem:[#allocation5 + $0x1ac] sm:$0xf]
    %v319 = vld [vmem:[#allocation5 + $0x1b0] sm:$0xff]
    %v320 = vld [vmem:[#allocation5 + $0x1b8] sm:$0xf]
    %v321 = vld [vmem:[#allocation5 + $0x1bc] sm:$0xff]
    %v322 = vld [vmem:[#allocation5 + $0x1c4] sm:$0xf]
    %v323 = vld [vmem:[#allocation5 + $0x1c8] sm:$0xff]
    %v324 = vld [vmem:[#allocation5 + $0x1d0] sm:$0xf]
    %v325 = vld [vmem:[#allocation5 + $0x1d4] sm:$0xff]
    %v326 = vld [vmem:[#allocation5 + $0x1dc] sm:$0xf]
    %v327 = vld [vmem:[#allocation5 + $0x1e0] sm:$0xff]
    %v328 = vld [vmem:[#allocation5 + $0x1e8] sm:$0xf]
    %v329 = vld [vmem:[#allocation5 + $0x1ec] sm:$0xff]
    %v330 = vld [vmem:[#allocation5 + $0x1f4] sm:$0xf]
    %v331 = vld [vmem:[#allocation5 + $0x1f8] sm:$0xff]
    %v332 = vld [vmem:[#allocation5 + $0x200] sm:$0xf]
    %v333 = vld [vmem:[#allocation5 + $0x204] sm:$0xff]
    %v334 = vld [vmem:[#allocation5 + $0x20c] sm:$0xf]
    %v335 = vld [vmem:[#allocation5 + $0x210] sm:$0xff]
    %v336 = vld [vmem:[#allocation5 + $0x218] sm:$0xf]
    %v337 = vld [vmem:[#allocation5 + $0x21c] sm:$0xff]
    %v338 = vld [vmem:[#allocation5 + $0x224] sm:$0xf]
    %v339 = vld [vmem:[#allocation5 + $0x228] sm:$0xff]
    %v340 = vld [vmem:[#allocation5 + $0x230] sm:$0xf]
    %v341 = vld [vmem:[#allocation5 + $0x234] sm:$0xff]
    %v342 = vld [vmem:[#allocation5 + $0x23c] sm:$0xf]
    %v343 = vld [vmem:[#allocation5 + $0x240] sm:$0xff]
    %v344 = vld [vmem:[#allocation5 + $0x248] sm:$0xf]
    %v345 = vld [vmem:[#allocation5 + $0x24c] sm:$0xff]
    %v346 = vld [vmem:[#allocation5 + $0x254] sm:$0xf]
    %v347 = vld [vmem:[#allocation5 + $0x258] sm:$0xff]
    %v348 = vld [vmem:[#allocation5 + $0x260] sm:$0xf]
    %v349 = vld [vmem:[#allocation5 + $0x264] sm:$0xff]
    %v350 = vld [vmem:[#allocation5 + $0x26c] sm:$0xf]
    %v351 = vld [vmem:[#allocation5 + $0x270] sm:$0xff]
    %v352 = vld [vmem:[#allocation5 + $0x278] sm:$0xf]
    %v353 = vld [vmem:[#allocation5 + $0x27c] sm:$0xff]
    %v354 = vld [vmem:[#allocation5 + $0x284] sm:$0xf]
    %v355 = vld [vmem:[#allocation5 + $0x288] sm:$0xff]
    %v356 = vld [vmem:[#allocation5 + $0x290] sm:$0xf]
    %v357 = vld [vmem:[#allocation5 + $0x294] sm:$0xff]
    %v358 = vld [vmem:[#allocation5 + $0x29c] sm:$0xf]
    %v359 = vld [vmem:[#allocation5 + $0x2a0] sm:$0xff]
    %v360 = vld [vmem:[#allocation5 + $0x2a8] sm:$0xf]
    %v361 = vld [vmem:[#allocation5 + $0x2ac] sm:$0xff]
    %v362 = vld [vmem:[#allocation5 + $0x2b4] sm:$0xf]
    %v363 = vld [vmem:[#allocation5 + $0x2b8] sm:$0xff]
    %v364 = vld [vmem:[#allocation5 + $0x2c0] sm:$0xf]
    %v365 = vld [vmem:[#allocation5 + $0x2c4] sm:$0xff]
    %v366 = vld [vmem:[#allocation5 + $0x2cc] sm:$0xf]
    %v367 = vld [vmem:[#allocation5 + $0x2d0] sm:$0xff]
    %v368 = vld [vmem:[#allocation5 + $0x2d8] sm:$0xf]
    %v369 = vld [vmem:[#allocation5 + $0x2dc] sm:$0xff]
    %v370 = vld [vmem:[#allocation5 + $0x2e4] sm:$0xf]
    %v371 = vld [vmem:[#allocation5 + $0x2e8] sm:$0xff]
    %v372 = vld [vmem:[#allocation5 + $0x2f0] sm:$0xf]
    %v373 = vld [vmem:[#allocation5 + $0x2f4] sm:$0xff]
    %v374 = vld [vmem:[#allocation5 + $0x2fc] sm:$0xf]
    %v375 = vld [vmem:[%s4] sm:$0x7]
    %v377 = vlaneseq
    %v378 = vshrl.u32 %v377, 7
    %v379 = vsub.s32 0, %v378
    %v380 = vrot.slane %v375, %v379
    %v381 = vlaneseq
    %v382 = vshrl.u32 %v381, 7
    %v383 = vsub.s32 1, %v382
    %v384 = vrot.slane %v375, %v383
    %v385 = vlaneseq
    %v386 = vshrl.u32 %v385, 7
    %v387 = vsub.s32 2, %v386
    %v388 = vrot.slane %v375, %v387
    %v520 = vunpack.c.l.b16 %v247
    %v521 = vunpack.c.h.b16 %v247
    %v522 = vunpack.c.l.b16 %v248
    %v523 = vunpack.c.l.b16 %v249
    %v524 = vunpack.c.h.b16 %v249
    %v525 = vunpack.c.l.b16 %v250
    %v526 = vunpack.c.l.b16 %v251
    %v527 = vunpack.c.h.b16 %v251
    %v528 = vunpack.c.l.b16 %v252
    %v529 = vunpack.c.l.b16 %v253
    %v530 = vunpack.c.h.b16 %v253
    %v531 = vunpack.c.l.b16 %v254
    %v532 = vunpack.c.l.b16 %v255
    %v533 = vunpack.c.h.b16 %v255
    %v534 = vunpack.c.l.b16 %v256
    %v535 = vunpack.c.l.b16 %v257
    %v536 = vunpack.c.h.b16 %v257
    %v537 = vunpack.c.l.b16 %v258
    %v538 = vunpack.c.l.b16 %v259
    %v539 = vunpack.c.h.b16 %v259
    %v540 = vunpack.c.l.b16 %v260
    %v541 = vunpack.c.l.b16 %v261
    %v542 = vunpack.c.h.b16 %v261
    %v543 = vunpack.c.l.b16 %v262
    %v544 = vunpack.c.l.b16 %v263
    %v545 = vunpack.c.h.b16 %v263
    %v546 = vunpack.c.l.b16 %v264
    %v547 = vunpack.c.l.b16 %v265
    %v548 = vunpack.c.h.b16 %v265
    %v549 = vunpack.c.l.b16 %v266
    %v550 = vunpack.c.l.b16 %v267
    %v551 = vunpack.c.h.b16 %v267
    %v552 = vunpack.c.l.b16 %v268
    %v553 = vunpack.c.l.b16 %v269
    %v554 = vunpack.c.h.b16 %v269
    %v555 = vunpack.c.l.b16 %v270
    %v556 = vunpack.c.l.b16 %v271
    %v557 = vunpack.c.h.b16 %v271
    %v558 = vunpack.c.l.b16 %v272
    %v559 = vunpack.c.l.b16 %v273
    %v560 = vunpack.c.h.b16 %v273
    %v561 = vunpack.c.l.b16 %v274
    %v562 = vunpack.c.l.b16 %v275
    %v563 = vunpack.c.h.b16 %v275
    %v564 = vunpack.c.l.b16 %v276
    %v565 = vunpack.c.l.b16 %v277
    %v566 = vunpack.c.h.b16 %v277
    %v567 = vunpack.c.l.b16 %v278
    %v568 = vunpack.c.l.b16 %v279
    %v569 = vunpack.c.h.b16 %v279
    %v570 = vunpack.c.l.b16 %v280
    %v571 = vunpack.c.l.b16 %v281
    %v572 = vunpack.c.h.b16 %v281
    %v573 = vunpack.c.l.b16 %v282
    %v574 = vunpack.c.l.b16 %v283
    %v575 = vunpack.c.h.b16 %v283
    %v576 = vunpack.c.l.b16 %v284
    %v577 = vunpack.c.l.b16 %v285
    %v578 = vunpack.c.h.b16 %v285
    %v579 = vunpack.c.l.b16 %v286
    %v580 = vunpack.c.l.b16 %v287
    %v581 = vunpack.c.h.b16 %v287
    %v582 = vunpack.c.l.b16 %v288
    %v583 = vunpack.c.l.b16 %v289
    %v584 = vunpack.c.h.b16 %v289
    %v585 = vunpack.c.l.b16 %v290
    %v586 = vunpack.c.l.b16 %v291
    %v587 = vunpack.c.h.b16 %v291
    %v588 = vunpack.c.l.b16 %v292
    %v589 = vunpack.c.l.b16 %v293
    %v590 = vunpack.c.h.b16 %v293
    %v591 = vunpack.c.l.b16 %v294
    %v592 = vunpack.c.l.b16 %v295
    %v593 = vunpack.c.h.b16 %v295
    %v594 = vunpack.c.l.b16 %v296
    %v595 = vunpack.c.l.b16 %v297
    %v596 = vunpack.c.h.b16 %v297
    %v597 = vunpack.c.l.b16 %v298
    %v598 = vunpack.c.l.b16 %v299
    %v599 = vunpack.c.h.b16 %v299
    %v600 = vunpack.c.l.b16 %v300
    %v601 = vunpack.c.l.b16 %v301
    %v602 = vunpack.c.h.b16 %v301
    %v603 = vunpack.c.l.b16 %v302
    %v604 = vunpack.c.l.b16 %v303
    %v605 = vunpack.c.h.b16 %v303
    %v606 = vunpack.c.l.b16 %v304
    %v607 = vunpack.c.l.b16 %v305
    %v608 = vunpack.c.h.b16 %v305
    %v609 = vunpack.c.l.b16 %v306
    %v610 = vunpack.c.l.b16 %v307
    %v611 = vunpack.c.h.b16 %v307
    %v612 = vunpack.c.l.b16 %v308
    %v613 = vunpack.c.l.b16 %v309
    %v614 = vunpack.c.h.b16 %v309
    %v615 = vunpack.c.l.b16 %v310
    %v616 = vunpack.c.l.b16 %v311
    %v617 = vunpack.c.h.b16 %v311
    %v618 = vunpack.c.l.b16 %v312
    %v619 = vunpack.c.l.b16 %v313
    %v620 = vunpack.c.h.b16 %v313
    %v621 = vunpack.c.l.b16 %v314
    %v622 = vunpack.c.l.b16 %v315
    %v623 = vunpack.c.h.b16 %v315
    %v624 = vunpack.c.l.b16 %v316
    %v625 = vunpack.c.l.b16 %v317
    %v626 = vunpack.c.h.b16 %v317
    %v627 = vunpack.c.l.b16 %v318
    %v628 = vunpack.c.l.b16 %v319
    %v629 = vunpack.c.h.b16 %v319
    %v630 = vunpack.c.l.b16 %v320
    %v631 = vunpack.c.l.b16 %v321
    %v632 = vunpack.c.h.b16 %v321
    %v633 = vunpack.c.l.b16 %v322
    %v634 = vunpack.c.l.b16 %v323
    %v635 = vunpack.c.h.b16 %v323
    %v636 = vunpack.c.l.b16 %v324
    %v637 = vunpack.c.l.b16 %v325
    %v638 = vunpack.c.h.b16 %v325
    %v639 = vunpack.c.l.b16 %v326
    %v640 = vunpack.c.l.b16 %v327
    %v641 = vunpack.c.h.b16 %v327
    %v642 = vunpack.c.l.b16 %v328
    %v643 = vunpack.c.l.b16 %v329
    %v644 = vunpack.c.h.b16 %v329
    %v645 = vunpack.c.l.b16 %v330
    %v646 = vunpack.c.l.b16 %v331
    %v647 = vunpack.c.h.b16 %v331
    %v648 = vunpack.c.l.b16 %v332
    %v649 = vunpack.c.l.b16 %v333
    %v650 = vunpack.c.h.b16 %v333
    %v651 = vunpack.c.l.b16 %v334
    %v652 = vunpack.c.l.b16 %v335
    %v653 = vunpack.c.h.b16 %v335
    %v654 = vunpack.c.l.b16 %v336
    %v655 = vunpack.c.l.b16 %v337
    %v656 = vunpack.c.h.b16 %v337
    %v657 = vunpack.c.l.b16 %v338
    %v658 = vunpack.c.l.b16 %v339
    %v659 = vunpack.c.h.b16 %v339
    %v660 = vunpack.c.l.b16 %v340
    %v661 = vunpack.c.l.b16 %v341
    %v662 = vunpack.c.h.b16 %v341
    %v663 = vunpack.c.l.b16 %v342
    %v664 = vunpack.c.l.b16 %v343
    %v665 = vunpack.c.h.b16 %v343
    %v666 = vunpack.c.l.b16 %v344
    %v667 = vunpack.c.l.b16 %v345
    %v668 = vunpack.c.h.b16 %v345
    %v669 = vunpack.c.l.b16 %v346
    %v670 = vunpack.c.l.b16 %v347
    %v671 = vunpack.c.h.b16 %v347
    %v672 = vunpack.c.l.b16 %v348
    %v673 = vunpack.c.l.b16 %v349
    %v674 = vunpack.c.h.b16 %v349
    %v675 = vunpack.c.l.b16 %v350
    %v676 = vunpack.c.l.b16 %v351
    %v677 = vunpack.c.h.b16 %v351
    %v678 = vunpack.c.l.b16 %v352
    %v679 = vunpack.c.l.b16 %v353
    %v680 = vunpack.c.h.b16 %v353
    %v681 = vunpack.c.l.b16 %v354
    %v682 = vunpack.c.l.b16 %v355
    %v683 = vunpack.c.h.b16 %v355
    %v684 = vunpack.c.l.b16 %v356
    %v685 = vunpack.c.l.b16 %v357
    %v686 = vunpack.c.h.b16 %v357
    %v687 = vunpack.c.l.b16 %v358
    %v688 = vunpack.c.l.b16 %v359
    %v689 = vunpack.c.h.b16 %v359
    %v690 = vunpack.c.l.b16 %v360
    %v691 = vunpack.c.l.b16 %v361
    %v692 = vunpack.c.h.b16 %v361
    %v693 = vunpack.c.l.b16 %v362
    %v694 = vunpack.c.l.b16 %v363
    %v695 = vunpack.c.h.b16 %v363
    %v696 = vunpack.c.l.b16 %v364
    %v697 = vunpack.c.l.b16 %v365
    %v698 = vunpack.c.h.b16 %v365
    %v699 = vunpack.c.l.b16 %v366
    %v700 = vunpack.c.l.b16 %v367
    %v701 = vunpack.c.h.b16 %v367
    %v702 = vunpack.c.l.b16 %v368
    %v703 = vunpack.c.l.b16 %v369
    %v704 = vunpack.c.h.b16 %v369
    %v705 = vunpack.c.l.b16 %v370
    %v706 = vunpack.c.l.b16 %v371
    %v707 = vunpack.c.h.b16 %v371
    %v708 = vunpack.c.l.b16 %v372
    %v709 = vunpack.c.l.b16 %v373
    %v710 = vunpack.c.h.b16 %v373
    %v711 = vunpack.c.l.b16 %v374
    %v712 = vpack.c.b16 %v523, %v520
    %v713 = vpack.c.b16 %v524, %v521
    %v714 = vpack.c.b16 %v525, %v522
    %v715 = vpack.c.b16 %v529, %v526
    %v716 = vpack.c.b16 %v530, %v527
    %v717 = vpack.c.b16 %v531, %v528
    %v718 = vpack.c.b16 %v535, %v532
    %v719 = vpack.c.b16 %v536, %v533
    %v720 = vpack.c.b16 %v537, %v534
    %v721 = vpack.c.b16 %v541, %v538
    %v722 = vpack.c.b16 %v542, %v539
    %v723 = vpack.c.b16 %v543, %v540
    %v724 = vpack.c.b16 %v547, %v544
    %v725 = vpack.c.b16 %v548, %v545
    %v726 = vpack.c.b16 %v549, %v546
    %v727 = vpack.c.b16 %v553, %v550
    %v728 = vpack.c.b16 %v554, %v551
    %v729 = vpack.c.b16 %v555, %v552
    %v730 = vpack.c.b16 %v559, %v556
    %v731 = vpack.c.b16 %v560, %v557
    %v732 = vpack.c.b16 %v561, %v558
    %v733 = vpack.c.b16 %v565, %v562
    %v734 = vpack.c.b16 %v566, %v563
    %v735 = vpack.c.b16 %v567, %v564
    %v736 = vpack.c.b16 %v571, %v568
    %v737 = vpack.c.b16 %v572, %v569
    %v738 = vpack.c.b16 %v573, %v570
    %v739 = vpack.c.b16 %v577, %v574
    %v740 = vpack.c.b16 %v578, %v575
    %v741 = vpack.c.b16 %v579, %v576
    %v742 = vpack.c.b16 %v583, %v580
    %v743 = vpack.c.b16 %v584, %v581
    %v744 = vpack.c.b16 %v585, %v582
    %v745 = vpack.c.b16 %v589, %v586
    %v746 = vpack.c.b16 %v590, %v587
    %v747 = vpack.c.b16 %v591, %v588
    %v748 = vpack.c.b16 %v595, %v592
    %v749 = vpack.c.b16 %v596, %v593
    %v750 = vpack.c.b16 %v597, %v594
    %v751 = vpack.c.b16 %v601, %v598
    %v752 = vpack.c.b16 %v602, %v599
    %v753 = vpack.c.b16 %v603, %v600
    %v754 = vpack.c.b16 %v607, %v604
    %v755 = vpack.c.b16 %v608, %v605
    %v756 = vpack.c.b16 %v609, %v606
    %v757 = vpack.c.b16 %v613, %v610
    %v758 = vpack.c.b16 %v614, %v611
    %v759 = vpack.c.b16 %v615, %v612
    %v760 = vpack.c.b16 %v619, %v616
    %v761 = vpack.c.b16 %v620, %v617
    %v762 = vpack.c.b16 %v621, %v618
    %v763 = vpack.c.b16 %v625, %v622
    %v764 = vpack.c.b16 %v626, %v623
    %v765 = vpack.c.b16 %v627, %v624
    %v766 = vpack.c.b16 %v631, %v628
    %v767 = vpack.c.b16 %v632, %v629
    %v768 = vpack.c.b16 %v633, %v630
    %v769 = vpack.c.b16 %v637, %v634
    %v770 = vpack.c.b16 %v638, %v635
    %v771 = vpack.c.b16 %v639, %v636
    %v772 = vpack.c.b16 %v643, %v640
    %v773 = vpack.c.b16 %v644, %v641
    %v774 = vpack.c.b16 %v645, %v642
    %v775 = vpack.c.b16 %v649, %v646
    %v776 = vpack.c.b16 %v650, %v647
    %v777 = vpack.c.b16 %v651, %v648
    %v778 = vpack.c.b16 %v655, %v652
    %v779 = vpack.c.b16 %v656, %v653
    %v780 = vpack.c.b16 %v657, %v654
    %v781 = vpack.c.b16 %v661, %v658
    %v782 = vpack.c.b16 %v662, %v659
    %v783 = vpack.c.b16 %v663, %v660
    %v784 = vpack.c.b16 %v667, %v664
    %v785 = vpack.c.b16 %v668, %v665
    %v786 = vpack.c.b16 %v669, %v666
    %v787 = vpack.c.b16 %v673, %v670
    %v788 = vpack.c.b16 %v674, %v671
    %v789 = vpack.c.b16 %v675, %v672
    %v790 = vpack.c.b16 %v679, %v676
    %v791 = vpack.c.b16 %v680, %v677
    %v792 = vpack.c.b16 %v681, %v678
    %v793 = vpack.c.b16 %v685, %v682
    %v794 = vpack.c.b16 %v686, %v683
    %v795 = vpack.c.b16 %v687, %v684
    %v796 = vpack.c.b16 %v691, %v688
    %v797 = vpack.c.b16 %v692, %v689
    %v798 = vpack.c.b16 %v693, %v690
    %v799 = vpack.c.b16 %v697, %v694
    %v800 = vpack.c.b16 %v698, %v695
    %v801 = vpack.c.b16 %v699, %v696
    %v802 = vpack.c.b16 %v703, %v700
    %v803 = vpack.c.b16 %v704, %v701
    %v804 = vpack.c.b16 %v705, %v702
    %v805 = vpack.c.b16 %v709, %v706
    %v806 = vpack.c.b16 %v710, %v707
    %v807 = vpack.c.b16 %v711, %v708
    %904 = vmatprep.subr.bf16.mxu0 %v734
    %905 = vmatpush1.bf16.msra.mxu0 %v733
    %906 = vmatprep.subr.bf16.mxu0 %v731
    %907 = vmatpush1.bf16.msra.mxu0 %v730
    %908 = vmatprep.subr.bf16.mxu0 %v728
    %909 = vmatpush1.bf16.msra.mxu0 %v727
    %910 = vmatprep.subr.bf16.mxu0 %v725
    %911 = vmatpush1.bf16.msra.mxu0 %v724
    %912 = vmatprep.subr.bf16.mxu0 %v722
    %913 = vmatpush1.bf16.msra.mxu0 %v721
    %914 = vmatprep.subr.bf16.mxu0 %v719
    %915 = vmatpush1.bf16.msra.mxu0 %v718
    %916 = vmatprep.subr.bf16.mxu0 %v716
    %917 = vmatpush1.bf16.msra.mxu0 %v715
    %918 = vmatprep.subr.bf16.mxu0 %v713
    %919 = vmatpush1.bf16.msra.mxu0 %v712
    %920 = vmatprep.subr.bf16.mxu0 %v758
    %921 = vmatpush2.bf16.msra.mxu0 %v757
    %922 = vmatprep.subr.bf16.mxu0 %v755
    %923 = vmatpush2.bf16.msra.mxu0 %v754
    %924 = vmatprep.subr.bf16.mxu0 %v752
    %925 = vmatpush2.bf16.msra.mxu0 %v751
    %926 = vmatprep.subr.bf16.mxu0 %v749
    %927 = vmatpush2.bf16.msra.mxu0 %v748
    %928 = vmatprep.subr.bf16.mxu0 %v746
    %929 = vmatpush2.bf16.msra.mxu0 %v745
    %930 = vmatprep.subr.bf16.mxu0 %v743
    %931 = vmatpush2.bf16.msra.mxu0 %v742
    %932 = vmatprep.subr.bf16.mxu0 %v740
    %933 = vmatpush2.bf16.msra.mxu0 %v739
    %934 = vmatprep.subr.bf16.mxu0 %v737
    %935 = vmatpush2.bf16.msra.mxu0 %v736
    %936 = vmatprep.mubr.bf16.mxu0 %v244
    %937 = vmatmul.mubr.bf16.gmra.mxu0 %v243
    %v938 = vpop.f32.mrf.mxu0
    %v939 = vadd.f32 %v380, %v938
    %v940 = vpop.f32.mrf.mxu0
    %v941 = vadd.f32 %v384, %v940
    %v942 = vpop.f32.mrf.mxu0
    %v943 = vpop.f32.mrf.mxu0
    %944 = vdwg.mxu0
    %945 = vmatprep.subr.bf16.mxu0 %v782
    %946 = vmatpush1.bf16.msra.mxu0 %v781
    %947 = vmatprep.subr.bf16.mxu0 %v779
    %948 = vmatpush1.bf16.msra.mxu0 %v778
    %949 = vmatprep.subr.bf16.mxu0 %v776
    %950 = vmatpush1.bf16.msra.mxu0 %v775
    %951 = vmatprep.subr.bf16.mxu0 %v773
    %952 = vmatpush1.bf16.msra.mxu0 %v772
    %953 = vmatprep.subr.bf16.mxu0 %v770
    %954 = vmatpush1.bf16.msra.mxu0 %v769
    %955 = vmatprep.subr.bf16.mxu0 %v767
    %956 = vmatpush1.bf16.msra.mxu0 %v766
    %957 = vmatprep.subr.bf16.mxu0 %v764
    %958 = vmatpush1.bf16.msra.mxu0 %v763
    %959 = vmatprep.subr.bf16.mxu0 %v761
    %960 = vmatpush1.bf16.msra.mxu0 %v760
    %961 = vmatprep.subr.bf16.mxu0 %v806
    %962 = vmatpush2.bf16.msra.mxu0 %v805
    %963 = vmatprep.subr.bf16.mxu0 %v803
    %964 = vmatpush2.bf16.msra.mxu0 %v802
    %965 = vmatprep.subr.bf16.mxu0 %v800
    %966 = vmatpush2.bf16.msra.mxu0 %v799
    %967 = vmatprep.subr.bf16.mxu0 %v797
    %968 = vmatpush2.bf16.msra.mxu0 %v796
    %969 = vmatprep.subr.bf16.mxu0 %v794
    %970 = vmatpush2.bf16.msra.mxu0 %v793
    %971 = vmatprep.subr.bf16.mxu0 %v791
    %972 = vmatpush2.bf16.msra.mxu0 %v790
    %973 = vmatprep.subr.bf16.mxu0 %v788
    %974 = vmatpush2.bf16.msra.mxu0 %v787
    %975 = vmatprep.subr.bf16.mxu0 %v785
    %976 = vmatpush2.bf16.msra.mxu0 %v784
    %977 = vmatprep.mubr.bf16.mxu0 %v246
    %978 = vmatmul.mubr.bf16.gmra.mxu0 %v245
    %v979 = vpop.f32.mrf.mxu0
    %v980 = vadd.f32 %v939, %v979
    %v981 = vpop.f32.mrf.mxu0
    %v982 = vadd.f32 %v941, %v981
    %v983 = vpop.f32.mrf.mxu0
    %v984 = vpop.f32.mrf.mxu0
    %985 = vdwg.mxu0
    %986 = vmatprep.subr.bf16.mxu0 0
    %987 = vmatpush1.bf16.msra.mxu0 %v735
    %988 = vmatprep.subr.bf16.mxu0 0
    %989 = vmatpush1.bf16.msra.mxu0 %v732
    %990 = vmatprep.subr.bf16.mxu0 0
    %991 = vmatpush1.bf16.msra.mxu0 %v729
    %992 = vmatprep.subr.bf16.mxu0 0
    %993 = vmatpush1.bf16.msra.mxu0 %v726
    %994 = vmatprep.subr.bf16.mxu0 0
    %995 = vmatpush1.bf16.msra.mxu0 %v723
    %996 = vmatprep.subr.bf16.mxu0 0
    %997 = vmatpush1.bf16.msra.mxu0 %v720
    %998 = vmatprep.subr.bf16.mxu0 0
    %999 = vmatpush1.bf16.msra.mxu0 %v717
    %1000 = vmatprep.subr.bf16.mxu0 0
    %1001 = vmatpush1.bf16.msra.mxu0 %v714
    %1002 = vmatprep.subr.bf16.mxu0 0
    %1003 = vmatpush2.bf16.msra.mxu0 %v759
    %1004 = vmatprep.subr.bf16.mxu0 0
    %1005 = vmatpush2.bf16.msra.mxu0 %v756
    %1006 = vmatprep.subr.bf16.mxu0 0
    %1007 = vmatpush2.bf16.msra.mxu0 %v753
    %1008 = vmatprep.subr.bf16.mxu0 0
    %1009 = vmatpush2.bf16.msra.mxu0 %v750
    %1010 = vmatprep.subr.bf16.mxu0 0
    %1011 = vmatpush2.bf16.msra.mxu0 %v747
    %1012 = vmatprep.subr.bf16.mxu0 0
    %1013 = vmatpush2.bf16.msra.mxu0 %v744
    %1014 = vmatprep.subr.bf16.mxu0 0
    %1015 = vmatpush2.bf16.msra.mxu0 %v741
    %1016 = vmatprep.subr.bf16.mxu0 0
    %1017 = vmatpush2.bf16.msra.mxu0 %v738
    %1018 = vmatprep.mubr.bf16.mxu0 %v244
    %1019 = vmatmul.mubr.bf16.gmra.mxu0 %v243
    %v1020 = vpop.f32.mrf.mxu0
    %v1021 = vadd.f32 %v388, %v1020
    %v1022 = vpop.f32.mrf.mxu0
    %v1023 = vpop.f32.mrf.mxu0
    %v1024 = vpop.f32.mrf.mxu0
    %1025 = vdwg.mxu0
    %1026 = vmatprep.subr.bf16.mxu0 0
    %1027 = vmatpush1.bf16.msra.mxu0 %v783
    %1028 = vmatprep.subr.bf16.mxu0 0
    %1029 = vmatpush1.bf16.msra.mxu0 %v780
    %1030 = vmatprep.subr.bf16.mxu0 0
    %1031 = vmatpush1.bf16.msra.mxu0 %v777
    %1032 = vmatprep.subr.bf16.mxu0 0
    %1033 = vmatpush1.bf16.msra.mxu0 %v774
    %1034 = vmatprep.subr.bf16.mxu0 0
    %1035 = vmatpush1.bf16.msra.mxu0 %v771
    %1036 = vmatprep.subr.bf16.mxu0 0
    %1037 = vmatpush1.bf16.msra.mxu0 %v768
    %1038 = vmatprep.subr.bf16.mxu0 0
    %1039 = vmatpush1.bf16.msra.mxu0 %v765
    %1040 = vmatprep.subr.bf16.mxu0 0
    %1041 = vmatpush1.bf16.msra.mxu0 %v762
    %1042 = vmatprep.subr.bf16.mxu0 0
    %1043 = vmatpush2.bf16.msra.mxu0 %v807
    %1044 = vmatprep.subr.bf16.mxu0 0
    %1045 = vmatpush2.bf16.msra.mxu0 %v804
    %1046 = vmatprep.subr.bf16.mxu0 0
    %1047 = vmatpush2.bf16.msra.mxu0 %v801
    %1048 = vmatprep.subr.bf16.mxu0 0
    %1049 = vmatpush2.bf16.msra.mxu0 %v798
    %1050 = vmatprep.subr.bf16.mxu0 0
    %1051 = vmatpush2.bf16.msra.mxu0 %v795
    %1052 = vmatprep.subr.bf16.mxu0 0
    %1053 = vmatpush2.bf16.msra.mxu0 %v792
    %1054 = vmatprep.subr.bf16.mxu0 0
    %1055 = vmatpush2.bf16.msra.mxu0 %v789
    %1056 = vmatprep.subr.bf16.mxu0 0
    %1057 = vmatpush2.bf16.msra.mxu0 %v786
    %1058 = vmatprep.mubr.bf16.mxu0 %v246
    %1059 = vmatmul.mubr.bf16.gmra.mxu0 %v245
    %v1060 = vpop.f32.mrf.mxu0
    %v1061 = vadd.f32 %v1021, %v1060
    %v1062 = vpop.f32.mrf.mxu0
    %v1063 = vpop.f32.mrf.mxu0
    %v1064 = vpop.f32.mrf.mxu0
    %1065 = vdwg.mxu0
    %v1066 = vmax.f32 %v980, 0.0
    %v1067 = vmax.f32 %v982, 0.0
    %v1068 = vmax.f32 %v1061, 0.0
    %v1069 = vpack.c.bf16 %v1066, %v1066
    %v1070 = vpack.c.bf16 %v1067, %v1067
    %v1071 = vpack.c.bf16 %v1068, %v1068
    %v1072 = vld [vmem:[#allocation7] sm:$0xf]
    %v1073 = vld [vmem:[#allocation7 + $0x4] sm:$0xf]
    %v1074 = vld [vmem:[#allocation7 + $0x8] sm:$0xf]
    %v1075 = vld [vmem:[#allocation7 + $0xc] sm:$0xf]
    %v1076 = vld [vmem:[#allocation7 + $0x10] sm:$0xf]
    %v1077 = vld [vmem:[#allocation7 + $0x14] sm:$0xf]
    %v1078 = vld [vmem:[#allocation7 + $0x18] sm:$0xf]
    %v1079 = vld [vmem:[#allocation7 + $0x1c] sm:$0xf]
    %v1080 = vld [vmem:[#allocation7 + $0x20] sm:$0xf]
    %v1081 = vld [vmem:[#allocation7 + $0x24] sm:$0xf]
    %v1082 = vld [vmem:[#allocation7 + $0x28] sm:$0xf]
    %v1083 = vld [vmem:[#allocation7 + $0x2c] sm:$0xf]
    %v1084 = vld [vmem:[#allocation7 + $0x30] sm:$0xf]
    %v1085 = vld [vmem:[#allocation7 + $0x34] sm:$0xf]
    %v1086 = vld [vmem:[#allocation7 + $0x38] sm:$0xf]
    %v1087 = vld [vmem:[#allocation7 + $0x3c] sm:$0xf]
    %v1088 = vld [vmem:[#allocation7 + $0x40] sm:$0xf]
    %v1089 = vld [vmem:[#allocation7 + $0x44] sm:$0xf]
    %v1090 = vld [vmem:[#allocation7 + $0x48] sm:$0xf]
    %v1091 = vld [vmem:[#allocation7 + $0x4c] sm:$0xf]
    %v1092 = vld [vmem:[#allocation7 + $0x50] sm:$0xf]
    %v1093 = vld [vmem:[#allocation7 + $0x54] sm:$0xf]
    %v1094 = vld [vmem:[#allocation7 + $0x58] sm:$0xf]
    %v1095 = vld [vmem:[#allocation7 + $0x5c] sm:$0xf]
    %v1096 = vld [vmem:[#allocation7 + $0x60] sm:$0xf]
    %v1097 = vld [vmem:[#allocation7 + $0x64] sm:$0xf]
    %v1098 = vld [vmem:[#allocation7 + $0x68] sm:$0xf]
    %v1099 = vld [vmem:[#allocation7 + $0x6c] sm:$0xf]
    %v1100 = vld [vmem:[#allocation7 + $0x70] sm:$0xf]
    %v1101 = vld [vmem:[#allocation7 + $0x74] sm:$0xf]
    %v1102 = vld [vmem:[#allocation7 + $0x78] sm:$0xf]
    %v1103 = vld [vmem:[#allocation7 + $0x7c] sm:$0xf]
    %v1104 = vld [vmem:[#allocation7 + $0x80] sm:$0xf]
    %v1105 = vld [vmem:[#allocation7 + $0x84] sm:$0xf]
    %v1106 = vld [vmem:[#allocation7 + $0x88] sm:$0xf]
    %v1107 = vld [vmem:[#allocation7 + $0x8c] sm:$0xf]
    %v1108 = vld [vmem:[#allocation7 + $0x90] sm:$0xf]
    %v1109 = vld [vmem:[#allocation7 + $0x94] sm:$0xf]
    %v1110 = vld [vmem:[#allocation7 + $0x98] sm:$0xf]
    %v1111 = vld [vmem:[#allocation7 + $0x9c] sm:$0xf]
    %v1112 = vld [vmem:[#allocation7 + $0xa0] sm:$0xf]
    %v1113 = vld [vmem:[#allocation7 + $0xa4] sm:$0xf]
    %v1114 = vld [vmem:[#allocation7 + $0xa8] sm:$0xf]
    %v1115 = vld [vmem:[#allocation7 + $0xac] sm:$0xf]
    %v1116 = vld [vmem:[#allocation7 + $0xb0] sm:$0xf]
    %v1117 = vld [vmem:[#allocation7 + $0xb4] sm:$0xf]
    %v1118 = vld [vmem:[#allocation7 + $0xb8] sm:$0xf]
    %v1119 = vld [vmem:[#allocation7 + $0xbc] sm:$0xf]
    %v1120 = vld [vmem:[%s6] sm:$0x1]
    %v1122 = vlaneseq
    %v1123 = vshrl.u32 %v1122, 7
    %v1124 = vsub.s32 0, %v1123
    %v1125 = vrot.slane %v1120, %v1124
    %v1175 = vunpack.c.l.b16 %v1072
    %v1176 = vunpack.c.l.b16 %v1073
    %v1177 = vunpack.c.l.b16 %v1074
    %v1178 = vunpack.c.l.b16 %v1075
    %v1179 = vunpack.c.l.b16 %v1076
    %v1180 = vunpack.c.l.b16 %v1077
    %v1181 = vunpack.c.l.b16 %v1078
    %v1182 = vunpack.c.l.b16 %v1079
    %v1183 = vunpack.c.l.b16 %v1080
    %v1184 = vunpack.c.l.b16 %v1081
    %v1185 = vunpack.c.l.b16 %v1082
    %v1186 = vunpack.c.l.b16 %v1083
    %v1187 = vunpack.c.l.b16 %v1084
    %v1188 = vunpack.c.l.b16 %v1085
    %v1189 = vunpack.c.l.b16 %v1086
    %v1190 = vunpack.c.l.b16 %v1087
    %v1191 = vunpack.c.l.b16 %v1088
    %v1192 = vunpack.c.l.b16 %v1089
    %v1193 = vunpack.c.l.b16 %v1090
    %v1194 = vunpack.c.l.b16 %v1091
    %v1195 = vunpack.c.l.b16 %v1092
    %v1196 = vunpack.c.l.b16 %v1093
    %v1197 = vunpack.c.l.b16 %v1094
    %v1198 = vunpack.c.l.b16 %v1095
    %v1199 = vunpack.c.l.b16 %v1096
    %v1200 = vunpack.c.l.b16 %v1097
    %v1201 = vunpack.c.l.b16 %v1098
    %v1202 = vunpack.c.l.b16 %v1099
    %v1203 = vunpack.c.l.b16 %v1100
    %v1204 = vunpack.c.l.b16 %v1101
    %v1205 = vunpack.c.l.b16 %v1102
    %v1206 = vunpack.c.l.b16 %v1103
    %v1207 = vunpack.c.l.b16 %v1104
    %v1208 = vunpack.c.l.b16 %v1105
    %v1209 = vunpack.c.l.b16 %v1106
    %v1210 = vunpack.c.l.b16 %v1107
    %v1211 = vunpack.c.l.b16 %v1108
    %v1212 = vunpack.c.l.b16 %v1109
    %v1213 = vunpack.c.l.b16 %v1110
    %v1214 = vunpack.c.l.b16 %v1111
    %v1215 = vunpack.c.l.b16 %v1112
    %v1216 = vunpack.c.l.b16 %v1113
    %v1217 = vunpack.c.l.b16 %v1114
    %v1218 = vunpack.c.l.b16 %v1115
    %v1219 = vunpack.c.l.b16 %v1116
    %v1220 = vunpack.c.l.b16 %v1117
    %v1221 = vunpack.c.l.b16 %v1118
    %v1222 = vunpack.c.l.b16 %v1119
    %v1223 = vpack.c.b16 %v1176, %v1175
    %v1224 = vpack.c.b16 %v1178, %v1177
    %v1225 = vpack.c.b16 %v1180, %v1179
    %v1226 = vpack.c.b16 %v1182, %v1181
    %v1227 = vpack.c.b16 %v1184, %v1183
    %v1228 = vpack.c.b16 %v1186, %v1185
    %v1229 = vpack.c.b16 %v1188, %v1187
    %v1230 = vpack.c.b16 %v1190, %v1189
    %v1231 = vpack.c.b16 %v1192, %v1191
    %v1232 = vpack.c.b16 %v1194, %v1193
    %v1233 = vpack.c.b16 %v1196, %v1195
    %v1234 = vpack.c.b16 %v1198, %v1197
    %v1235 = vpack.c.b16 %v1200, %v1199
    %v1236 = vpack.c.b16 %v1202, %v1201
    %v1237 = vpack.c.b16 %v1204, %v1203
    %v1238 = vpack.c.b16 %v1206, %v1205
    %v1239 = vpack.c.b16 %v1208, %v1207
    %v1240 = vpack.c.b16 %v1210, %v1209
    %v1241 = vpack.c.b16 %v1212, %v1211
    %v1242 = vpack.c.b16 %v1214, %v1213
    %v1243 = vpack.c.b16 %v1216, %v1215
    %v1244 = vpack.c.b16 %v1218, %v1217
    %v1245 = vpack.c.b16 %v1220, %v1219
    %v1246 = vpack.c.b16 %v1222, %v1221
    %1271 = vmatprep.subr.bf16.mxu0 0
    %1272 = vmatpush1.bf16.msra.mxu0 %v1230
    %1273 = vmatprep.subr.bf16.mxu0 0
    %1274 = vmatpush1.bf16.msra.mxu0 %v1229
    %1275 = vmatprep.subr.bf16.mxu0 0
    %1276 = vmatpush1.bf16.msra.mxu0 %v1228
    %1277 = vmatprep.subr.bf16.mxu0 0
    %1278 = vmatpush1.bf16.msra.mxu0 %v1227
    %1279 = vmatprep.subr.bf16.mxu0 0
    %1280 = vmatpush1.bf16.msra.mxu0 %v1226
    %1281 = vmatprep.subr.bf16.mxu0 0
    %1282 = vmatpush1.bf16.msra.mxu0 %v1225
    %1283 = vmatprep.subr.bf16.mxu0 0
    %1284 = vmatpush1.bf16.msra.mxu0 %v1224
    %1285 = vmatprep.subr.bf16.mxu0 0
    %1286 = vmatpush1.bf16.msra.mxu0 %v1223
    %1287 = vmatprep.subr.bf16.mxu0 0
    %1288 = vmatpush2.bf16.msra.mxu0 %v1238
    %1289 = vmatprep.subr.bf16.mxu0 0
    %1290 = vmatpush2.bf16.msra.mxu0 %v1237
    %1291 = vmatprep.subr.bf16.mxu0 0
    %1292 = vmatpush2.bf16.msra.mxu0 %v1236
    %1293 = vmatprep.subr.bf16.mxu0 0
    %1294 = vmatpush2.bf16.msra.mxu0 %v1235
    %1295 = vmatprep.subr.bf16.mxu0 0
    %1296 = vmatpush2.bf16.msra.mxu0 %v1234
    %1297 = vmatprep.subr.bf16.mxu0 0
    %1298 = vmatpush2.bf16.msra.mxu0 %v1233
    %1299 = vmatprep.subr.bf16.mxu0 0
    %1300 = vmatpush2.bf16.msra.mxu0 %v1232
    %1301 = vmatprep.subr.bf16.mxu0 0
    %1302 = vmatpush2.bf16.msra.mxu0 %v1231
    %1303 = vmatprep.mubr.bf16.mxu0 %v1070
    %1304 = vmatmul.mubr.bf16.gmra.mxu0 %v1069
    %v1305 = vpop.f32.mrf.mxu0
    %v1306 = vadd.f32 %v1125, %v1305
    %v1307 = vpop.f32.mrf.mxu0
    %v1308 = vpop.f32.mrf.mxu0
    %v1309 = vpop.f32.mrf.mxu0
    %1310 = vdwg.mxu0
    %1311 = vmatprep.subr.bf16.mxu0 0
    %1312 = vmatpush1.bf16.msra.mxu0 %v1246
    %1313 = vmatprep.subr.bf16.mxu0 0
    %1314 = vmatpush1.bf16.msra.mxu0 %v1245
    %1315 = vmatprep.subr.bf16.mxu0 0
    %1316 = vmatpush1.bf16.msra.mxu0 %v1244
    %1317 = vmatprep.subr.bf16.mxu0 0
    %1318 = vmatpush1.bf16.msra.mxu0 %v1243
    %1319 = vmatprep.subr.bf16.mxu0 0
    %1320 = vmatpush1.bf16.msra.mxu0 %v1242
    %1321 = vmatprep.subr.bf16.mxu0 0
    %1322 = vmatpush1.bf16.msra.mxu0 %v1241
    %1323 = vmatprep.subr.bf16.mxu0 0
    %1324 = vmatpush1.bf16.msra.mxu0 %v1240
    %1325 = vmatprep.subr.bf16.mxu0 0
    %1326 = vmatpush1.bf16.msra.mxu0 %v1239
    %1327 = vmatprep.subr.bf16.mxu0 0
    %1328 = vmatpush2.bf16.msra.mxu0 0
    %1329 = vmatprep.subr.bf16.mxu0 0
    %1330 = vmatpush2.bf16.msra.mxu0 0
    %1331 = vmatprep.subr.bf16.mxu0 0
    %1332 = vmatpush2.bf16.msra.mxu0 0
    %1333 = vmatprep.subr.bf16.mxu0 0
    %1334 = vmatpush2.bf16.msra.mxu0 0
    %1335 = vmatprep.subr.bf16.mxu0 0
    %1336 = vmatpush2.bf16.msra.mxu0 0
    %1337 = vmatprep.subr.bf16.mxu0 0
    %1338 = vmatpush2.bf16.msra.mxu0 0
    %1339 = vmatprep.subr.bf16.mxu0 0
    %1340 = vmatpush2.bf16.msra.mxu0 0
    %1341 = vmatprep.subr.bf16.mxu0 0
    %1342 = vmatpush2.bf16.msra.mxu0 0
    %1343 = vmatprep.mubr.bf16.mxu0 0
    %1344 = vmatmul.mubr.bf16.gmra.mxu0 %v1071
    %v1345 = vpop.f32.mrf.mxu0
    %v1346 = vadd.f32 %v1306, %v1345
    %v1347 = vpop.f32.mrf.mxu0
    %v1348 = vpop.f32.mrf.mxu0
    %v1349 = vpop.f32.mrf.mxu0
    %1350 = vdwg.mxu0
    %v1351 = vtanh.pop %v1346
    %1352 = vst [vmem:[#allocation8] sm:$0xff] %v1351
    // Predicated region
    $region42: #{tpu_custom_call.1} parent=1 // pred_check
      _
    $region43: #{tpu_custom_call.1} parent=1 // pred_check_branch
      %1354 = sbr.rel (0) target = $region45
    $region44: #{tpu_custom_call.1} parent=1 // pred_region
      %s1356 = ssub.s32 128, 128
      %1357 = vsyncadd [#allocation4], %s1356
      %s1359 = sshll.u32 [#allocation8], 4
      %s1360 = int_to_ptr.vmem [resolvable:$true] %s1359
      %1362 = dma.vmem_to_hbm [thread:$0]  %s1360, 128, %s7, [#allocation4]
    $region45: #{tpu_custom_call.1} parent=1 // pred_fallthru
      _
    // Predicated region
    $region46: #{tpu_custom_call.1} parent=1 // pred_check
      _
    $region47: #{tpu_custom_call.1} parent=1 // pred_check_branch
      %1364 = sbr.rel (0) target = $region49
    $region48: #{tpu_custom_call.1} parent=1 // pred_region
      %1365 = dma.done [#allocation4], 128
    $region49: #{tpu_custom_call.1} parent=1 // pred_fallthru
      _
    %1366 = vsyncpa [#allocation3], 1
    %1367 = vsyncpa [#allocation6], 1
    %1368 = vsyncpa [#allocation4], 1

</llo_original>
